<compile_context>
chip_gen: v7x
topology: tpu7x:2x2x1
jax: 0.10.0
libtpu: 0.0.40
codegen_flags: <defaults>
</compile_context>

<pallas_src>
import jax
import jax.numpy as jnp
from jax.experimental import pallas as pl
from jax.experimental.pallas import tpu as pltpu

_LANE = 128  # TPU native lane width


def reranker_score_kernel(hidden_ref, w_ref, b_ref, scores_ref):
    """One batch tile of the linear scoring head.

    hidden_ref: (TR, H)   storage dtype (f32 here; bf16 in production)
    w_ref:      (H, 128)  storage dtype; column 0 = head weight, rest zero
    b_ref:      (1, 1)    f32, SMEM (scalar bias)
    scores_ref: (TR, 1)   f32
    """
    # MXU matmul with f32 accumulation; result streams straight from the MXU,
    # no (TR, H)-sized elementwise temporary.
    acc = jnp.dot(hidden_ref[...], w_ref[...],
                  preferred_element_type=jnp.float32)        # (TR, 128) f32
    scores_ref[...] = acc[:, :1] + b_ref[0, 0]


def _choose_rows_per_tile(n_rows, h_dim, itemsize,
                          target_tile_bytes=12 * 1024 * 1024):
    """Rows (query-passage pairs) per grid step for the (rows, H) hidden tile.

    ~12 MiB tiles amortize the ~0.35 us per-grid-step overhead even at v7x's
    3.2 TB/s HBM BW; double-buffered (2 x 12 MiB) plus the resident weight,
    the (TR, 1) output blocks and the matmul result temporary stays well under
    the 48 MiB vmem_limit_bytes requested below (and v7x's 64 MiB physical).
    """
    align = max(8, 32 // max(1, itemsize))        # sublane pack: 8 f32, 16 bf16
    # Row bytes as laid out in VMEM (lane dim padded to 128).
    row_bytes = pl.cdiv(h_dim, _LANE) * _LANE * itemsize
    # Small problem: one tile covering the whole array (block == full dims is
    # always legal) -- no padding, no pipelining needed.
    if n_rows < 4 * align or n_rows * row_bytes <= 2 * 1024 * 1024:
        return n_rows
    tr = max(align, (target_tile_bytes // row_bytes) // align * align)
    # Use >= 2 tiles and prefer an even tile count so the single "parallel"
    # grid axis splits evenly across v7x's two TensorCores (best effort; no
    # effect on single-TensorCore v5e/v6e).
    num_tiles = max(2, pl.cdiv(n_rows, tr))
    if num_tiles % 2:
        num_tiles += 1
    tr = pl.cdiv(pl.cdiv(n_rows, num_tiles), align) * align
    return max(align, tr)


@jax.jit
def reranker_forward(hidden, w, b):
    """Forward pass of the concrete reranker head + CE loss.

    hidden: (B, G, H) pooled hidden states (G passages per query; the positive
            passage is index 0 of each group).
    w:      (1, H) scoring-head weight;  b: (1, 1) f32 bias.
    Returns (scores (B, G) f32, loss scalar f32).
    """
    B, G, H = hidden.shape
    n_rows = B * G
    itemsize = jnp.dtype(hidden.dtype).itemsize

    # Flatten to (B*G, H): dense sublane layout, contiguous tile DMAs.
    h2 = hidden.reshape(n_rows, H)
    # Head weight as an (H, 128) column block (col 0 = w, rest zero): native
    # MXU output tile, DMA'd once (constant index_map -> VMEM resident).
    w_cols = jnp.pad(w.reshape(H, 1).astype(hidden.dtype),
                     ((0, 0), (0, _LANE - 1)))

    tr = _choose_rows_per_tile(n_rows, H, itemsize)
    num_tiles = pl.cdiv(n_rows, tr)
    n_pad = num_tiles * tr
    if n_pad != n_rows:
        # Zero-padded rows score exactly `bias`; they are sliced off below.
        h2 = jnp.pad(h2, ((0, n_pad - n_rows), (0, 0)))

    scores_col = pl.pallas_call(
        reranker_score_kernel,
        out_shape=jax.ShapeDtypeStruct((n_pad, 1), jnp.float32),
        grid=(num_tiles,),
        in_specs=[
            # hidden: pipelined (double-buffered) batch tiles.
            pl.BlockSpec((tr, H), lambda i: (i, 0)),
            # weight: constant block index -> stays VMEM-resident.
            pl.BlockSpec((H, _LANE), lambda i: (0, 0)),
            # scalar bias: SMEM, no (8,128) VMEM padding.
            pl.BlockSpec(memory_space=pltpu.MemorySpace.SMEM),
        ],
        out_specs=pl.BlockSpec((tr, 1), lambda i: (i, 0)),
        compiler_params=pltpu.CompilerParams(
            dimension_semantics=("parallel",),
            vmem_limit_bytes=48 * 1024 * 1024,
        ),
    )(h2, w_cols, b)

    scores = scores_col[:n_rows, 0].reshape(B, G)

    # CrossEntropyLoss(scores, target=zeros(B)): per-group logsumexp minus the
    # positive (index-0) score, averaged over groups.  Done on the tiny (B, G)
    # score matrix outside the kernel (perf review: removes one narrow output
    # stream per grid step; keeps the batch grid axis fully parallel).
    m = jnp.max(scores, axis=-1, keepdims=True)
    lse = m[:, 0] + jnp.log(jnp.sum(jnp.exp(scores - m), axis=-1))
    loss = jnp.mean(lse - scores[:, 0])
    return scores, loss


def reference_forward(hidden, w, b):
    """Pure-JAX reference (exact f32 elementwise math, no MXU)."""
    hf = hidden.astype(jnp.float32)
    wf = w.reshape(-1).astype(jnp.float32)
    scores = jnp.sum(hf * wf[None, None, :], axis=-1) + b[0, 0]
    lse = jax.scipy.special.logsumexp(scores, axis=-1)
    loss = jnp.mean(lse - scores[:, 0])
    return scores, loss


if __name__ == "__main__":
    # Small shapes implied by the module: train_batch_size=2, group_size=4
    # (positive passage at index 0 of each group), pooled hidden size 32.
    B, G, H = 2, 4, 32

    key = jax.random.PRNGKey(0)
    k_h, k_w, k_b = jax.random.split(key, 3)
    hidden = jax.random.normal(k_h, (B, G, H), dtype=jnp.float32)
    w = jax.random.normal(k_w, (1, H), dtype=jnp.float32) * 0.05
    b = jax.random.normal(k_b, (1, 1), dtype=jnp.float32) * 0.01

    scores, loss = reranker_forward(hidden, w, b)
    jax.block_until_ready((scores, loss))

    ref_scores, ref_loss = reference_forward(hidden, w, b)
    # The kernel's f32 matmul may run with reduced-precision (bf16) MXU passes
    # depending on generation / default matmul precision; allow for that.
    assert jnp.allclose(scores, ref_scores, atol=5e-3, rtol=5e-3)
    assert jnp.allclose(loss, ref_loss, atol=5e-3, rtol=5e-3)

    print("KERNEL_OK")
</pallas_src>

<mosaic_0001>
module attributes {stable_mosaic.version = 11 : i64} {
  func.func @reranker_score_kernel(%arg0: i32, %arg1: memref<8x32xf32, #tpu.memory_space<vmem>>, %arg2: memref<32x128xf32, #tpu.memory_space<vmem>>, %arg3: memref<1x1xf32, #tpu.memory_space<smem>>, %arg4: memref<8x1xf32, #tpu.memory_space<vmem>>) attributes {dimension_semantics = [#tpu.dimension_semantics<parallel>], iteration_bounds = array<i64: 1>, scalar_prefetch = 0 : i64, scratch_operands = 0 : i64, tpu.core_type = #tpu.core_type<tc>, window_params = [{transform_indices = @transform_0, window_bounds = array<i64: 8, 32>}, {pipeline_mode = #tpu.pipeline_mode<synchronous>, transform_indices = @transform_1, window_bounds = array<i64: 32, 128>}, {transform_indices = @transform_2, window_bounds = array<i64: 1, 1>}, {transform_indices = @transform_3, window_bounds = array<i64: 8, 1>}]} {
    %c0 = arith.constant 0 : index
    %c0_0 = arith.constant 0 : index
    %0 = vector.load %arg1[%c0, %c0_0] : memref<8x32xf32, #tpu.memory_space<vmem>>, vector<8x32xf32>
    %c0_1 = arith.constant 0 : index
    %c0_2 = arith.constant 0 : index
    %1 = vector.load %arg2[%c0_1, %c0_2] : memref<32x128xf32, #tpu.memory_space<vmem>>, vector<32x128xf32>
    %cst = arith.constant dense<0.000000e+00> : vector<8x128xf32>
    %2 = tpu.matmul %0, %1, %cst {dimension_numbers = #tpu.dot_dimension_numbers<[1], [0], [0], [1], [0, 0, 1, 1], [], []>} : vector<8x32xf32>, vector<32x128xf32>, vector<8x128xf32> -> vector<8x128xf32>
    %3 = vector.extract_strided_slice %2 {offsets = [0, 0], sizes = [8, 1], strides = [1, 1]} : vector<8x128xf32> to vector<8x1xf32>
    %c0_3 = arith.constant 0 : index
    %c0_4 = arith.constant 0 : index
    %4 = memref.load %arg3[%c0_3, %c0_4] : memref<1x1xf32, #tpu.memory_space<smem>>
    %5 = vector.broadcast %4 : f32 to vector<8x1xf32>
    %6 = arith.addf %3, %5 : vector<8x1xf32>
    %c0_5 = arith.constant 0 : index
    %c0_6 = arith.constant 0 : index
    %7 = vector.load %arg4[%c0_5, %c0_6] : memref<8x1xf32, #tpu.memory_space<vmem>>, vector<8x1xf32>
    tpu.vector_store %arg4[%c0_5, %c0_6], %6 {strides = array<i32>} : memref<8x1xf32, #tpu.memory_space<vmem>>, vector<8x1xf32>,
    return
  }
  func.func @transform_0(%arg0: i32) -> (i32, i32) {
    %c0_i32 = arith.constant 0 : i32
    %c0_i32_0 = arith.constant 0 : i32
    return %arg0, %c0_i32 : i32, i32
  }
  func.func @transform_1(%arg0: i32) -> (i32, i32) {
    %c0_i32 = arith.constant 0 : i32
    %c0_i32_0 = arith.constant 0 : i32
    %c0_i32_1 = arith.constant 0 : i32
    return %c0_i32, %c0_i32_0 : i32, i32
  }
  func.func @transform_2(%arg0: i32) -> (i32, i32) {
    %c0_i32 = arith.constant 0 : i32
    %c0_i32_0 = arith.constant 0 : i32
    %c0_i32_1 = arith.constant 0 : i32
    return %c0_i32, %c0_i32_0 : i32, i32
  }
  func.func @transform_3(%arg0: i32) -> (i32, i32) {
    %c0_i32 = arith.constant 0 : i32
    %c0_i32_0 = arith.constant 0 : i32
    return %arg0, %c0_i32 : i32, i32
  }
}

</mosaic_0001>

<llo_original>
// kernel: squeeze.2
$region0: #{squeeze.2}
  %s0 = inlined_call_operand.vmem [shape: f32[8], index: 0, kind: input, shape index: {}]
  %s1 = inlined_call_operand.vmem [shape: f32[2,4], index: 1, kind: output, shape index: {}]
  $region1: #{squeeze.2} parent=0
    #allocation0 [shape = 'u8[4096]{0}', space=vmem, size = 0x1000, scoped, tag = 'scoped mem for output reshape']
    #allocation1 [shape = 'u8[4096]{0}', space=vmem, size = 0x1000, scoped, tag = 'scoped mem for input reshape']
    %s3 = sshllo.u32 0, 1
    %v4 = vld [vmem:[%s0] sm:%s3]
    %5 = vst [vmem:[#allocation1] sm:%s3] %v4
    %v6 = vld [vmem:[#allocation1] sm:$0x1]
    %vm7 = vcmask 31744
    %8 = vst.msk [vmem:[#allocation0] sm:$0x1] %vm7, %v6
    %v9 = vld [vmem:[#allocation1] sm:$0x1]
    %10 = vrot.lane.b32.xlu0 %v9, 124
    %v11 = vpop.permute.xlu0 %10
    %vm12 = vcmask 31744
    %s13 = scalar_lea.vmem [#allocation0], 1
    %14 = vst.msk [vmem:[%s13] sm:$0x1] %vm12, %v11
    %s16 = sshllo.u32 0, 2
    %v18 = vld [vmem:[#allocation0] sm:%s16]
    %s19 = sshllo.u32 0, 2
    %20 = vst [vmem:[%s1] sm:%s19] %v18

// kernel: reranker_forward.1
$region0: #{reranker_forward.1}
  #allocation0 [shape = 'u32[]', space=smem, size = 0x4, offset = 0x4, fixed_abs, tag = 'smem constant byte address 0x4 - core index']
  #allocation1 [shape = 'u32[144,128]{1,0:T(1,128)}', space=vmem, size = 0x12000, scoped, tag = 'internal scratch']
  #allocation2 [shape = 'f32[1,1]{1,0:T(1,128)S(6)}', space=smem, size = 0x200, scoped, tag = 'scoped memory for reranker_forward.1']
  %s0 = inlined_call_operand.vmem [shape: f32[8,32], index: 0, kind: input, shape index: {}]
  %s1 = inlined_call_operand.vmem [shape: f32[32,128], index: 1, kind: input, shape index: {}]
  %s2 = inlined_call_operand.<no memory space> [shape: f32[1,1], index: 2, kind: input, shape index: {}]
  %s3 = inlined_call_operand.vmem [shape: f32[8,1], index: 3, kind: output, shape index: {}]
  %s4 = sld [smem:[#allocation0]]
  $region22: #{reranker_forward.1} parent=0
    _
  %s6 = ssub.s32 1, %s4
  %s7 = scalar_select 0, %s6, %s4
  %8 = sst [smem:[#allocation2]] %s2
  // Predicated region
  $region2: #{reranker_forward.1} parent=0 // pred_check
    _
  $region3: #{reranker_forward.1} parent=0 // pred_check_branch
    %10 = sbr.rel (0) target = $region5
  $region4: #{reranker_forward.1} parent=0 // pred_region
    _
  $region5: #{reranker_forward.1} parent=0 // pred_fallthru
    _
  // Predicated region
  $region6: #{reranker_forward.1} parent=0 // pred_check
    _
  $region7: #{reranker_forward.1} parent=0 // pred_check_branch
    %12 = sbr.rel (0) target = $region9
  $region8: #{reranker_forward.1} parent=0 // pred_region
    _
  $region9: #{reranker_forward.1} parent=0 // pred_fallthru
    _
  // Predicated region
  $region10: #{reranker_forward.1} parent=0 // pred_check
    _
  $region11: #{reranker_forward.1} parent=0 // pred_check_branch
    %14 = sbr.rel (0) target = $region13
  $region12: #{reranker_forward.1} parent=0 // pred_region
    _
  $region13: #{reranker_forward.1} parent=0 // pred_fallthru
    _
  %v15 = vld [vmem:[%s0] sm:$0xff]
  %v16 = vld [vmem:[%s1] sm:$0xff]
  %v17 = vld [vmem:[%s1 + $0x8] sm:$0xff]
  %v18 = vld [vmem:[%s1 + $0x10] sm:$0xff]
  %v19 = vld [vmem:[%s1 + $0x18] sm:$0xff]
  %vm20 = vcmask 261120
  %v22 = vsel %vm20, %v15, 0
  %24 = vmatprep.subr.mxu0 0.0
  %25 = vmatpush1.msra.mxu0 %v16
  %26 = vmatprep.subr.mxu0 0.0
  %27 = vmatpush1.msra.mxu0 %v17
  %28 = vmatprep.subr.mxu0 0.0
  %29 = vmatpush1.msra.mxu0 %v18
  %30 = vmatprep.subr.mxu0 0.0
  %31 = vmatpush1.msra.mxu0 %v19
  %32 = vmatprep.subr.mxu0 0.0
  %33 = vmatpush1.msra.mxu0 0.0
  %34 = vmatprep.subr.mxu0 0.0
  %35 = vmatpush1.msra.mxu0 0.0
  %36 = vmatprep.subr.mxu0 0.0
  %37 = vmatpush1.msra.mxu0 0.0
  %38 = vmatprep.subr.mxu0 0.0
  %39 = vmatpush1.msra.mxu0 0.0
  %40 = vmatprep.subr.mxu0 0.0
  %41 = vmatpush1.msra.mxu0 0.0
  %42 = vmatprep.subr.mxu0 0.0
  %43 = vmatpush1.msra.mxu0 0.0
  %44 = vmatprep.subr.mxu0 0.0
  %45 = vmatpush1.msra.mxu0 0.0
  %46 = vmatprep.subr.mxu0 0.0
  %47 = vmatpush1.msra.mxu0 0.0
  %48 = vmatprep.subr.mxu0 0.0
  %49 = vmatpush1.msra.mxu0 0.0
  %50 = vmatprep.subr.mxu0 0.0
  %51 = vmatpush1.msra.mxu0 0.0
  %52 = vmatprep.subr.mxu0 0.0
  %53 = vmatpush1.msra.mxu0 0.0
  %54 = vmatprep.subr.mxu0 0.0
  %55 = vmatpush1.msra.mxu0 0.0
  %56 = vmatprep.subr.mxu0 0.0
  %57 = vmatpush1.msra.mxu0 0.0
  %58 = vmatprep.subr.mxu0 0.0
  %59 = vmatpush1.msra.mxu0 0.0
  %60 = vmatprep.subr.mxu0 0.0
  %61 = vmatpush1.msra.mxu0 0.0
  %62 = vmatprep.subr.mxu0 0.0
  %63 = vmatpush1.msra.mxu0 0.0
  %64 = vmatprep.subr.mxu0 0.0
  %65 = vmatpush1.msra.mxu0 0.0
  %66 = vmatprep.subr.mxu0 0.0
  %67 = vmatpush1.msra.mxu0 0.0
  %68 = vmatprep.subr.mxu0 0.0
  %69 = vmatpush1.msra.mxu0 0.0
  %70 = vmatprep.subr.mxu0 0.0
  %71 = vmatpush1.msra.mxu0 0.0
  %72 = vmatprep.subr.mxu0 0.0
  %73 = vmatpush1.msra.mxu0 0.0
  %74 = vmatprep.subr.mxu0 0.0
  %75 = vmatpush1.msra.mxu0 0.0
  %76 = vmatprep.subr.mxu0 0.0
  %77 = vmatpush1.msra.mxu0 0.0
  %78 = vmatprep.subr.mxu0 0.0
  %79 = vmatpush1.msra.mxu0 0.0
  %80 = vmatprep.subr.mxu0 0.0
  %81 = vmatpush1.msra.mxu0 0.0
  %82 = vmatprep.subr.mxu0 0.0
  %83 = vmatpush1.msra.mxu0 0.0
  %84 = vmatprep.subr.mxu0 0.0
  %85 = vmatpush1.msra.mxu0 0.0
  %86 = vmatprep.subr.mxu0 0.0
  %87 = vmatpush1.msra.mxu0 0.0
  %88 = vmatprep.mubr.f32.mxu0 0.0
  %89 = vmatmul.mubr.f32.gmra.mrb[0].mxu0 %v22
  %v90 = vpop.f32.mrb[0].mxu0
  %v91 = vadd.f32 0.0, %v90
  %v92 = vpop.f32.mrb[0].mxu0
  %93 = vdwg.mxu0
  %s94 = sld [smem:[#allocation2]]
  %v95 = vstv %s94
  %v96 = vadd.f32 %v91, %v95
  %vm97 = vcmask 7168
  %98 = vst.msk [vmem:[%s3] sm:$0xff] %vm97, %v96
  // Predicated region
  $region14: #{reranker_forward.1} parent=0 // pred_check
    _
  $region15: #{reranker_forward.1} parent=0 // pred_check_branch
    %100 = sbr.rel (0) target = $region17
  $region16: #{reranker_forward.1} parent=0 // pred_region
    _
  $region17: #{reranker_forward.1} parent=0 // pred_fallthru
    _
  // Predicated region
  $region18: #{reranker_forward.1} parent=0 // pred_check
    _
  $region19: #{reranker_forward.1} parent=0 // pred_check_branch
    %102 = sbr.rel (0) target = $region21
  $region20: #{reranker_forward.1} parent=0 // pred_region
    _
  $region21: #{reranker_forward.1} parent=0 // pred_fallthru
    _

</llo_original>
